<compile_context>
chip_gen: v7x
topology: tpu7x:2x2x1
jax: 0.10.0
libtpu: 0.0.40
codegen_flags: <defaults>
</compile_context>

<pallas_src>
import jax
import jax.numpy as jnp
from jax import lax
from jax.experimental import pallas as pl
from jax.experimental.pallas import tpu as pltpu


def _round_up(x, m):
    return (x + m - 1) // m * m


def _generator_matmul_kernel(x_ref, w_ref, o_ref, acc_ref):
    # grid = (M//tm, N//tn, K//tk); K (axis 2) is the reduction axis ("arbitrary").
    @pl.when(pl.program_id(2) == 0)
    def _():
        acc_ref[...] = jnp.zeros_like(acc_ref)

    # x block: (tm, tk), w block: (tn, tk)  -> contract last dims of both.
    acc_ref[...] += lax.dot_general(
        x_ref[...],
        w_ref[...],
        dimension_numbers=(((1,), (1,)), ((), ())),
        preferred_element_type=jnp.float32,
    )

    @pl.when(pl.program_id(2) == pl.num_programs(2) - 1)
    def _():
        o_ref[...] = acc_ref[...].astype(o_ref.dtype)


def generator_forward(
    x,
    weight,
    *,
    tm=256,
    tn=2048,
    tk=1024,
    compute_dtype=jnp.bfloat16,
    out_dtype=None,
):
    """Pallas equivalent of Generator.forward.

    x:      (batch, seq, d_model)
    weight: (vocab_size, d_model)   -- nn.Linear weight layout, used as-is (no .T)
    returns (batch, seq, vocab_size) in out_dtype (default: x.dtype)
    """
    batch, seq, d_model = x.shape
    vocab_size, k_w = weight.shape
    assert k_w == d_model, "weight must be (vocab_size, d_model)"

    out_dtype = x.dtype if out_dtype is None else out_dtype

    M, K, N = batch * seq, d_model, vocab_size

    # Clamp tiles for small problems (avoid over-padding) while keeping TPU
    # layout granularity: sublane-dim multiples of 8, lane-dim multiples of 128.
    tm_eff = min(tm, _round_up(M, 8))
    tn_eff = min(tn, _round_up(N, 128))
    tk_eff = min(tk, _round_up(K, 128))

    M_p = _round_up(M, tm_eff)
    N_p = _round_up(N, tn_eff)
    K_p = _round_up(K, tk_eff)

    x2d = x.reshape(M, K).astype(compute_dtype)
    w = weight.astype(compute_dtype)

    # Zero-pad to tile multiples (zeros along K contribute nothing to the dot;
    # padded M/N rows/cols are sliced off below).
    if (M_p, K_p) != (M, K):
        x2d = jnp.pad(x2d, ((0, M_p - M), (0, K_p - K)))
    if (N_p, K_p) != (N, K):
        w = jnp.pad(w, ((0, N_p - N), (0, K_p - K)))

    grid = (M_p // tm_eff, N_p // tn_eff, K_p // tk_eff)

    out2d = pl.pallas_call(
        _generator_matmul_kernel,
        out_shape=jax.ShapeDtypeStruct((M_p, N_p), out_dtype),
        grid_spec=pltpu.PrefetchScalarGridSpec(
            num_scalar_prefetch=0,
            grid=grid,
            in_specs=[
                # x tile: (tm, tk)
                pl.BlockSpec((tm_eff, tk_eff), lambda i, j, k: (i, k)),
                # weight tile in native (vocab, d_model) layout: (tn, tk)
                pl.BlockSpec((tn_eff, tk_eff), lambda i, j, k: (j, k)),
            ],
            out_specs=pl.BlockSpec((tm_eff, tn_eff), lambda i, j, k: (i, j)),
            scratch_shapes=[pltpu.VMEM((tm_eff, tn_eff), jnp.float32)],
        ),
        compiler_params=pltpu.CompilerParams(
            dimension_semantics=("parallel", "parallel", "arbitrary"),
            # Large enough for double-buffered 256x2048-class tiles, still within
            # v7x's 64 MiB physical VMEM.
            vmem_limit_bytes=64 * 1024 * 1024,
        ),
    )(x2d, w)

    out2d = out2d[:M, :N]
    return out2d.reshape(batch, seq, N)


if __name__ == "__main__":
    # Small shapes consistent with the module's forward: (batch, seq, d_model)
    batch, seq, d_model, vocab_size = 2, 8, 32, 256

    key = jax.random.PRNGKey(0)
    kx, kw = jax.random.split(key)

    x = jax.random.normal(kx, (batch, seq, d_model), dtype=jnp.float32)
    # Deterministic init mimicking nn.Linear default scale (uniform +/- 1/sqrt(d_model))
    bound = 1.0 / (d_model ** 0.5)
    weight = jax.random.uniform(
        kw, (vocab_size, d_model), dtype=jnp.float32, minval=-bound, maxval=bound
    )

    logits = generator_forward(x, weight)
    jax.block_until_ready(logits)

    # Reference at the same compute precision (bf16 inputs, f32 accumulation).
    ref = jnp.einsum(
        "bsd,vd->bsv",
        x.astype(jnp.bfloat16),
        weight.astype(jnp.bfloat16),
        preferred_element_type=jnp.float32,
    ).astype(logits.dtype)

    assert logits.shape == (batch, seq, vocab_size)
    assert jnp.allclose(logits, ref, atol=1e-2, rtol=1e-2)

    print("KERNEL_OK")
</pallas_src>

<mosaic_0001>
module attributes {stable_mosaic.version = 11 : i64} {
  func.func @_generator_matmul_kernel(%arg0: i32, %arg1: i32, %arg2: i32, %arg3: memref<16x128xbf16, #tpu.memory_space<vmem>>, %arg4: memref<256x128xbf16, #tpu.memory_space<vmem>>, %arg5: memref<16x256xf32, #tpu.memory_space<vmem>>, %arg6: memref<16x256xf32, #tpu.memory_space<vmem>>) attributes {dimension_semantics = [#tpu.dimension_semantics<parallel>, #tpu.dimension_semantics<parallel>, #tpu.dimension_semantics<arbitrary>], iteration_bounds = array<i64: 1, 1, 1>, scalar_prefetch = 0 : i64, scratch_operands = 1 : i64, tpu.core_type = #tpu.core_type<tc>, window_params = [{transform_indices = @transform_0, window_bounds = array<i64: 16, 128>}, {transform_indices = @transform_1, window_bounds = array<i64: 256, 128>}, {transform_indices = @transform_2, window_bounds = array<i64: 16, 256>}]} {
    %c0_i32 = arith.constant 0 : i32
    %0 = arith.cmpi eq, %arg2, %c0_i32 : i32
    %1 = arith.extui %0 : i1 to i32
    %c0_i32_0 = arith.constant 0 : i32
    %2 = arith.cmpi ne, %1, %c0_i32_0 : i32
    scf.if %2 {
      %cst_10 = arith.constant 0.000000e+00 : f32
      %12 = vector.broadcast %cst_10 : f32 to vector<16x256xf32>
      %c0_11 = arith.constant 0 : index
      %c0_12 = arith.constant 0 : index
      %13 = vector.load %arg6[%c0_11, %c0_12] : memref<16x256xf32, #tpu.memory_space<vmem>>, vector<16x256xf32>
      tpu.vector_store %arg6[%c0_11, %c0_12], %12 {strides = array<i32>} : memref<16x256xf32, #tpu.memory_space<vmem>>, vector<16x256xf32>,
    } else {
    }
    %c0 = arith.constant 0 : index
    %c0_1 = arith.constant 0 : index
    %3 = vector.load %arg6[%c0, %c0_1] : memref<16x256xf32, #tpu.memory_space<vmem>>, vector<16x256xf32>
    %c0_2 = arith.constant 0 : index
    %c0_3 = arith.constant 0 : index
    %4 = vector.load %arg3[%c0_2, %c0_3] : memref<16x128xbf16, #tpu.memory_space<vmem>>, vector<16x128xbf16>
    %c0_4 = arith.constant 0 : index
    %c0_5 = arith.constant 0 : index
    %5 = vector.load %arg4[%c0_4, %c0_5] : memref<256x128xbf16, #tpu.memory_space<vmem>>, vector<256x128xbf16>
    %cst = arith.constant dense<0.000000e+00> : vector<16x256xf32>
    %6 = tpu.matmul %4, %5, %cst {dimension_numbers = #tpu.dot_dimension_numbers<[1], [1], [0], [0], [0, 0, 1, 0], [], []>} : vector<16x128xbf16>, vector<256x128xbf16>, vector<16x256xf32> -> vector<16x256xf32>
    %7 = arith.addf %3, %6 : vector<16x256xf32>
    %c0_6 = arith.constant 0 : index
    %c0_7 = arith.constant 0 : index
    %8 = vector.load %arg6[%c0_6, %c0_7] : memref<16x256xf32, #tpu.memory_space<vmem>>, vector<16x256xf32>
    tpu.vector_store %arg6[%c0_6, %c0_7], %7 {strides = array<i32>} : memref<16x256xf32, #tpu.memory_space<vmem>>, vector<16x256xf32>,
    %c0_i32_8 = arith.constant 0 : i32
    %9 = arith.cmpi eq, %arg2, %c0_i32_8 : i32
    %10 = arith.extui %9 : i1 to i32
    %c0_i32_9 = arith.constant 0 : i32
    %11 = arith.cmpi ne, %10, %c0_i32_9 : i32
    scf.if %11 {
      %c0_10 = arith.constant 0 : index
      %c0_11 = arith.constant 0 : index
      %12 = vector.load %arg6[%c0_10, %c0_11] : memref<16x256xf32, #tpu.memory_space<vmem>>, vector<16x256xf32>
      %c0_12 = arith.constant 0 : index
      %c0_13 = arith.constant 0 : index
      %13 = vector.load %arg5[%c0_12, %c0_13] : memref<16x256xf32, #tpu.memory_space<vmem>>, vector<16x256xf32>
      tpu.vector_store %arg5[%c0_12, %c0_13], %12 {strides = array<i32>} : memref<16x256xf32, #tpu.memory_space<vmem>>, vector<16x256xf32>,
    } else {
    }
    return
  }
  func.func @transform_0(%arg0: i32, %arg1: i32, %arg2: i32) -> (i32, i32) {
    %c0_i32 = arith.constant 0 : i32
    return %arg0, %arg2 : i32, i32
  }
  func.func @transform_1(%arg0: i32, %arg1: i32, %arg2: i32) -> (i32, i32) {
    %c0_i32 = arith.constant 0 : i32
    return %arg1, %arg2 : i32, i32
  }
  func.func @transform_2(%arg0: i32, %arg1: i32, %arg2: i32) -> (i32, i32) {
    %c0_i32 = arith.constant 0 : i32
    return %arg0, %arg1 : i32, i32
  }
}

</mosaic_0001>

<llo_original>
// kernel: tpu_custom_call.1
$region0: #{tpu_custom_call.1}
  #allocation0 [shape = 'u32[]', space=smem, size = 0x4, offset = 0x4, fixed_abs, tag = 'smem constant byte address 0x4 - core index']
  #allocation1 [shape = 'u32[144,128]{1,0:T(1,128)}', space=vmem, size = 0x12000, scoped, tag = 'internal scratch']
  #allocation2 [shape = 'f32[16,256]{1,0:T(8,128)}', space=vmem, size = 0x4000, scoped, tag = 'scratch operand']
  %s0 = inlined_call_operand.hbm [shape: bf16[16,128], index: 0, kind: input, shape index: {}]
  %s1 = inlined_call_operand.hbm [shape: bf16[256,128], index: 1, kind: input, shape index: {}]
  %s2 = inlined_call_operand.hbm [shape: f32[16,256], index: 2, kind: output, shape index: {}]
  %s3 = sld [smem:[#allocation0]]
  $region34: #{tpu_custom_call.1} parent=0
    _
  %s5 = ssub.s32 1, %s3
  %s6 = scalar_select 0, %s5, %s3
  $region1: #{tpu_custom_call.1} parent=0
    #allocation3 [shape = 'u8[4096]{0}', space=vmem, size = 0x1000, scoped, tag = 'input window, operand 0, single buffered']
    #allocation4 [shape = 's32[1]{0}', space=sflag, size = 0x4, scoped, tag = 'scoped memory for tpu_custom_call.1']
    #allocation5 [shape = 's32[1]{0}', space=sflag, size = 0x4, scoped, tag = 'scoped memory for tpu_custom_call.1']
    #allocation6 [shape = 'u8[65536]{0}', space=vmem, size = 0x10000, scoped, tag = 'input window, operand 1, single buffered']
    #allocation7 [shape = 's32[1]{0}', space=sflag, size = 0x4, scoped, tag = 'scoped memory for tpu_custom_call.1']
    #allocation8 [shape = 'u8[16384]{0}', space=vmem, size = 0x4000, scoped, tag = 'output window, operand 0, single buffered']
    %7 = vsyncpa [#allocation4], 0
    %8 = vsyncpa [#allocation7], 0
    %9 = vsyncpa [#allocation5], 0
    // Predicated region
    $region2: #{tpu_custom_call.1} parent=1 // pred_check
      _
    $region3: #{tpu_custom_call.1} parent=1 // pred_check_branch
      %11 = sbr.rel (0) target = $region5
    $region4: #{tpu_custom_call.1} parent=1 // pred_region
      %s13 = ssub.s32 128, 128
      %14 = vsyncadd [#allocation4], %s13
      %s15 = sshll.u32 [#allocation3], 4
      %s16 = int_to_ptr.vmem [resolvable:$true] %s15
      %21 = dma.hbm_to_vmem [thread:$0]  %s0, 128, %s16, [#allocation4], 64, 64, 4
    $region5: #{tpu_custom_call.1} parent=1 // pred_fallthru
      _
    // Predicated region
    $region6: #{tpu_custom_call.1} parent=1 // pred_check
      _
    $region7: #{tpu_custom_call.1} parent=1 // pred_check_branch
      %23 = sbr.rel (0) target = $region9
    $region8: #{tpu_custom_call.1} parent=1 // pred_region
      %s25 = ssub.s32 2048, 2048
      %26 = vsyncadd [#allocation7], %s25
      %s27 = sshll.u32 [#allocation6], 4
      %s28 = int_to_ptr.vmem [resolvable:$true] %s27
      %33 = dma.hbm_to_vmem [thread:$0]  %s1, 2048, %s28, [#allocation7], 64, 64, 4
    $region9: #{tpu_custom_call.1} parent=1 // pred_fallthru
      _
    // Predicated region
    $region10: #{tpu_custom_call.1} parent=1 // pred_check
      _
    $region11: #{tpu_custom_call.1} parent=1 // pred_check_branch
      %35 = sbr.rel (0) target = $region13
    $region12: #{tpu_custom_call.1} parent=1 // pred_region
      %36 = dma.done [#allocation4], 128
    $region13: #{tpu_custom_call.1} parent=1 // pred_fallthru
      _
    // Predicated region
    $region14: #{tpu_custom_call.1} parent=1 // pred_check
      _
    $region15: #{tpu_custom_call.1} parent=1 // pred_check_branch
      %38 = sbr.rel (0) target = $region17
    $region16: #{tpu_custom_call.1} parent=1 // pred_region
      %39 = dma.done [#allocation7], 2048
    $region17: #{tpu_custom_call.1} parent=1 // pred_fallthru
      _
    %p41 = scmp.eq.s32.totalorder 0, 0
    // Predicated region
    $region18: #{tpu_custom_call.1} parent=1 // pred_check
      %p42 = pneg %p41
    $region19: #{tpu_custom_call.1} parent=1 // pred_check_branch
      %44 = sbr.rel (%p42) target = $region21
    $region20: #{tpu_custom_call.1} parent=1 // pred_region
      %45 = vst [vmem:[#allocation2] sm:$0xff] 0.0
      %46 = vst [vmem:[#allocation2 + $0x8] sm:$0xff] 0.0
      %47 = vst [vmem:[#allocation2 + $0x10] sm:$0xff] 0.0
      %48 = vst [vmem:[#allocation2 + $0x18] sm:$0xff] 0.0
    $region21: #{tpu_custom_call.1} parent=1 // pred_fallthru
      _
    %v49 = vld [vmem:[#allocation2] sm:$0xff]
    %v50 = vld [vmem:[#allocation2 + $0x8] sm:$0xff]
    %v51 = vld [vmem:[#allocation2 + $0x10] sm:$0xff]
    %v52 = vld [vmem:[#allocation2 + $0x18] sm:$0xff]
    %v53 = vld [vmem:[#allocation3] sm:$0xf]
    %v54 = vld [vmem:[#allocation3 + $0x4] sm:$0xf]
    %v55 = vld [vmem:[#allocation6] sm:$0xf]
    %v56 = vld [vmem:[#allocation6 + $0x4] sm:$0xf]
    %v57 = vld [vmem:[#allocation6 + $0x8] sm:$0xf]
    %v58 = vld [vmem:[#allocation6 + $0xc] sm:$0xf]
    %v59 = vld [vmem:[#allocation6 + $0x10] sm:$0xf]
    %v60 = vld [vmem:[#allocation6 + $0x14] sm:$0xf]
    %v61 = vld [vmem:[#allocation6 + $0x18] sm:$0xf]
    %v62 = vld [vmem:[#allocation6 + $0x1c] sm:$0xf]
    %v63 = vld [vmem:[#allocation6 + $0x20] sm:$0xf]
    %v64 = vld [vmem:[#allocation6 + $0x24] sm:$0xf]
    %v65 = vld [vmem:[#allocation6 + $0x28] sm:$0xf]
    %v66 = vld [vmem:[#allocation6 + $0x2c] sm:$0xf]
    %v67 = vld [vmem:[#allocation6 + $0x30] sm:$0xf]
    %v68 = vld [vmem:[#allocation6 + $0x34] sm:$0xf]
    %v69 = vld [vmem:[#allocation6 + $0x38] sm:$0xf]
    %v70 = vld [vmem:[#allocation6 + $0x3c] sm:$0xf]
    %v71 = vld [vmem:[#allocation6 + $0x40] sm:$0xf]
    %v72 = vld [vmem:[#allocation6 + $0x44] sm:$0xf]
    %v73 = vld [vmem:[#allocation6 + $0x48] sm:$0xf]
    %v74 = vld [vmem:[#allocation6 + $0x4c] sm:$0xf]
    %v75 = vld [vmem:[#allocation6 + $0x50] sm:$0xf]
    %v76 = vld [vmem:[#allocation6 + $0x54] sm:$0xf]
    %v77 = vld [vmem:[#allocation6 + $0x58] sm:$0xf]
    %v78 = vld [vmem:[#allocation6 + $0x5c] sm:$0xf]
    %v79 = vld [vmem:[#allocation6 + $0x60] sm:$0xf]
    %v80 = vld [vmem:[#allocation6 + $0x64] sm:$0xf]
    %v81 = vld [vmem:[#allocation6 + $0x68] sm:$0xf]
    %v82 = vld [vmem:[#allocation6 + $0x6c] sm:$0xf]
    %v83 = vld [vmem:[#allocation6 + $0x70] sm:$0xf]
    %v84 = vld [vmem:[#allocation6 + $0x74] sm:$0xf]
    %v85 = vld [vmem:[#allocation6 + $0x78] sm:$0xf]
    %v86 = vld [vmem:[#allocation6 + $0x7c] sm:$0xf]
    %v89 = vunpack.c.l.b16 %v53
    %v90 = vunpack.c.l.b16 %v54
    %v91 = vpack.c.b16 %v90, %v89
    %v125 = vunpack.c.l.b16 %v55
    %v126 = vunpack.c.l.b16 %v56
    %v127 = vunpack.c.l.b16 %v57
    %v128 = vunpack.c.l.b16 %v58
    %v129 = vunpack.c.l.b16 %v59
    %v130 = vunpack.c.l.b16 %v60
    %v131 = vunpack.c.l.b16 %v61
    %v132 = vunpack.c.l.b16 %v62
    %v133 = vunpack.c.l.b16 %v63
    %v134 = vunpack.c.l.b16 %v64
    %v135 = vunpack.c.l.b16 %v65
    %v136 = vunpack.c.l.b16 %v66
    %v137 = vunpack.c.l.b16 %v67
    %v138 = vunpack.c.l.b16 %v68
    %v139 = vunpack.c.l.b16 %v69
    %v140 = vunpack.c.l.b16 %v70
    %v141 = vunpack.c.l.b16 %v71
    %v142 = vunpack.c.l.b16 %v72
    %v143 = vunpack.c.l.b16 %v73
    %v144 = vunpack.c.l.b16 %v74
    %v145 = vunpack.c.l.b16 %v75
    %v146 = vunpack.c.l.b16 %v76
    %v147 = vunpack.c.l.b16 %v77
    %v148 = vunpack.c.l.b16 %v78
    %v149 = vunpack.c.l.b16 %v79
    %v150 = vunpack.c.l.b16 %v80
    %v151 = vunpack.c.l.b16 %v81
    %v152 = vunpack.c.l.b16 %v82
    %v153 = vunpack.c.l.b16 %v83
    %v154 = vunpack.c.l.b16 %v84
    %v155 = vunpack.c.l.b16 %v85
    %v156 = vunpack.c.l.b16 %v86
    %v157 = vpack.c.b16 %v126, %v125
    %v158 = vpack.c.b16 %v128, %v127
    %v159 = vpack.c.b16 %v130, %v129
    %v160 = vpack.c.b16 %v132, %v131
    %v161 = vpack.c.b16 %v134, %v133
    %v162 = vpack.c.b16 %v136, %v135
    %v163 = vpack.c.b16 %v138, %v137
    %v164 = vpack.c.b16 %v140, %v139
    %v165 = vpack.c.b16 %v142, %v141
    %v166 = vpack.c.b16 %v144, %v143
    %v167 = vpack.c.b16 %v146, %v145
    %v168 = vpack.c.b16 %v148, %v147
    %v169 = vpack.c.b16 %v150, %v149
    %v170 = vpack.c.b16 %v152, %v151
    %v171 = vpack.c.b16 %v154, %v153
    %v172 = vpack.c.b16 %v156, %v155
    %189 = vmatprep.subr.bf16.mxu0 0
    %190 = vmatpush1.bf16.xpose.msra.mxu0 %v157
    %191 = vmatprep.subr.bf16.mxu0 0
    %192 = vmatpush1.bf16.xpose.msra.mxu0 %v158
    %193 = vmatprep.subr.bf16.mxu0 0
    %194 = vmatpush1.bf16.xpose.msra.mxu0 %v159
    %195 = vmatprep.subr.bf16.mxu0 0
    %196 = vmatpush1.bf16.xpose.msra.mxu0 %v160
    %197 = vmatprep.subr.bf16.mxu0 0
    %198 = vmatpush1.bf16.xpose.msra.mxu0 %v161
    %199 = vmatprep.subr.bf16.mxu0 0
    %200 = vmatpush1.bf16.xpose.msra.mxu0 %v162
    %201 = vmatprep.subr.bf16.mxu0 0
    %202 = vmatpush1.bf16.xpose.msra.mxu0 %v163
    %203 = vmatprep.subr.bf16.mxu0 0
    %204 = vmatpush1.bf16.xpose.msra.mxu0 %v164
    %205 = vmatprep.subr.bf16.mxu0 0
    %206 = vmatpush1.bf16.xpose.msra.mxu0 %v165
    %207 = vmatprep.subr.bf16.mxu0 0
    %208 = vmatpush1.bf16.xpose.msra.mxu0 %v166
    %209 = vmatprep.subr.bf16.mxu0 0
    %210 = vmatpush1.bf16.xpose.msra.mxu0 %v167
    %211 = vmatprep.subr.bf16.mxu0 0
    %212 = vmatpush1.bf16.xpose.msra.mxu0 %v168
    %213 = vmatprep.subr.bf16.mxu0 0
    %214 = vmatpush1.bf16.xpose.msra.mxu0 %v169
    %215 = vmatprep.subr.bf16.mxu0 0
    %216 = vmatpush1.bf16.xpose.msra.mxu0 %v170
    %217 = vmatprep.subr.bf16.mxu0 0
    %218 = vmatpush1.bf16.xpose.msra.mxu0 %v171
    %219 = vmatprep.subr.bf16.mxu0 0
    %220 = vmatpush1.bf16.xpose.msra.mxu0 %v172
    %221 = vmatprep.mubr.bf16.mxu0 0
    %222 = vmatmul.mubr.bf16.gmra.mrb[0].mxu0 %v91
    %v223 = vpop.f32.mrb[0].mxu0
    %v224 = vadd.f32 0.0, %v223
    %v225 = vpop.f32.mrb[0].mxu0
    %v226 = vadd.f32 0.0, %v225
    %v227 = vpop.f32.mrb[0].mxu0
    %v228 = vadd.f32 0.0, %v227
    %v229 = vpop.f32.mrb[0].mxu0
    %v230 = vadd.f32 0.0, %v229
    %231 = vdwg.mxu0
    %v232 = vadd.f32 %v49, %v224
    %v233 = vadd.f32 %v50, %v226
    %v234 = vadd.f32 %v51, %v228
    %v235 = vadd.f32 %v52, %v230
    %236 = vst [vmem:[#allocation2] sm:$0xff] %v232
    %237 = vst [vmem:[#allocation2 + $0x8] sm:$0xff] %v233
    %238 = vst [vmem:[#allocation2 + $0x10] sm:$0xff] %v234
    %239 = vst [vmem:[#allocation2 + $0x18] sm:$0xff] %v235
    // Predicated region
    $region22: #{tpu_custom_call.1} parent=1 // pred_check
      %p240 = pneg %p41
    $region23: #{tpu_custom_call.1} parent=1 // pred_check_branch
      %242 = sbr.rel (%p240) target = $region25
    $region24: #{tpu_custom_call.1} parent=1 // pred_region
      %v243 = vld [vmem:[#allocation2] sm:$0xff]
      %v244 = vld [vmem:[#allocation2 + $0x8] sm:$0xff]
      %v245 = vld [vmem:[#allocation2 + $0x10] sm:$0xff]
      %v246 = vld [vmem:[#allocation2 + $0x18] sm:$0xff]
      %247 = vst [vmem:[#allocation8] sm:$0xff] %v243
      %248 = vst [vmem:[#allocation8 + $0x8] sm:$0xff] %v244
      %249 = vst [vmem:[#allocation8 + $0x10] sm:$0xff] %v245
      %250 = vst [vmem:[#allocation8 + $0x18] sm:$0xff] %v246
    $region25: #{tpu_custom_call.1} parent=1 // pred_fallthru
      _
    // Predicated region
    $region26: #{tpu_custom_call.1} parent=1 // pred_check
      _
    $region27: #{tpu_custom_call.1} parent=1 // pred_check_branch
      %252 = sbr.rel (0) target = $region29
    $region28: #{tpu_custom_call.1} parent=1 // pred_region
      %s254 = ssub.s32 512, 512
      %255 = vsyncadd [#allocation5], %s254
      %s256 = sshll.u32 [#allocation8], 4
      %s257 = int_to_ptr.vmem [resolvable:$true] %s256
      %262 = dma.vmem_to_hbm [thread:$0]  %s257, 512, %s2, [#allocation5], 256, 256, 16
    $region29: #{tpu_custom_call.1} parent=1 // pred_fallthru
      _
    // Predicated region
    $region30: #{tpu_custom_call.1} parent=1 // pred_check
      _
    $region31: #{tpu_custom_call.1} parent=1 // pred_check_branch
      %264 = sbr.rel (0) target = $region33
    $region32: #{tpu_custom_call.1} parent=1 // pred_region
      %265 = dma.done [#allocation5], 512
    $region33: #{tpu_custom_call.1} parent=1 // pred_fallthru
      _
    %266 = vsyncpa [#allocation4], 1
    %267 = vsyncpa [#allocation7], 1
    %268 = vsyncpa [#allocation5], 1

</llo_original>
